<compile_context>
chip_gen: v5e
topology: v5e:2x2
jax: 0.10.0
libtpu: 0.0.40
codegen_flags: <defaults>
</compile_context>

<pallas_src>
import jax
import jax.numpy as jnp
from jax.experimental import pallas as pl
from jax.experimental.pallas import tpu as pltpu


def _round_up(x, m):
    return ((x + m - 1) // m) * m


def _ce_rows_kernel(x_ref, y_ref, loss_ref):
    """Per-row softmax cross-entropy for one (TILE_B, C_pad) tile of logits.

    Losses are stored as a lane-dense (1, 1, TILE_B) row so the output store
    lowers to unmasked vst rather than masked vst.msk partial stores.
    """
    x = x_ref[...].astype(jnp.float32)                        # (TB, Cp)
    y = y_ref[...]                                            # (TB, 1) int32

    m = jnp.max(x, axis=-1, keepdims=True)                    # (TB, 1)
    xm = x - m                                                # (TB, Cp)
    # TODO(synk): on v6e/v7x a bf16 exp (with f32 accumulation) would double
    # EUP throughput at a small accuracy cost; kept in f32 for exactness.
    lse = jnp.log(jnp.sum(jnp.exp(xm), axis=-1, keepdims=True))  # (TB, 1)

    # "Gather" x[i, y[i]] - m[i] via a lane-index comparison mask (VPU select).
    cols = jax.lax.broadcasted_iota(jnp.int32, x.shape, dimension=1)
    picked = jnp.sum(jnp.where(cols == y, xm, 0.0), axis=-1, keepdims=True)

    # (TB, 1) column -> (1, 1, TB) lane-dense row: one small XLU relayout per
    # step (XLU has slack in this HBM-stream-bound kernel).
    loss_ref[...] = jnp.reshape(lse - picked, loss_ref.shape)


def _vmem_capacity_bytes():
    """Per-core VMEM capacity; conservative 64 MiB (v7x) fallback."""
    try:
        info = pltpu.get_tpu_info()
        cap = int(getattr(info, "vmem_capacity_bytes", 0) or 0)
        if cap > 0:
            return cap
    except Exception:
        pass
    return 64 * 1024 * 1024


def _choose_tile_b(b, c_pad, itemsize, vmem_cap):
    """Row-tile size: ~1/3 of per-core VMEM for the double-buffered input tile
    plus the f32 temporaries the body materializes."""
    budget = vmem_cap // 3                      # ~21 MiB v7x, ~42 MiB v5e/v6e
    bytes_per_row = c_pad * (2 * itemsize + 4 * 4) + 4 * 128 * 4
    # Sublane packing of the input dtype: 8 rows (f32), 16 (bf16), 32 (int8/fp8).
    sub = 8 * max(1, 4 // max(itemsize, 1))
    tile = budget // max(bytes_per_row, 1)
    tile = max(sub, min(tile, 8192))
    b_pad = _round_up(b, sub)
    # On small-VMEM chips (v7x: 64 MiB/TC, 2 TensorCores) keep >= ~4 grid
    # steps so the "parallel" batch axis shards across cores and stays
    # pipelined; skipped on 128 MiB chips (single TC).
    if vmem_cap <= (64 << 20) and b_pad >= 4 * sub:
        quarter = _round_up(-(-b_pad // 4), sub)
        tile = min(tile, quarter)
    tile = max(sub, (tile // sub) * sub)
    return min(tile, b_pad)


def contrastive_embedding_classification_loss(embeddings, _pos=None, _neg=None,
                                              reduction='mean',
                                              embeddings_class=None,
                                              tile_b=None):
    """JAX/Pallas equivalent of ContrastiveEmbeddingClassificationObjective.forward."""
    if reduction is not None and reduction != 'mean':
        raise NotImplementedError()
    assert embeddings_class is not None
    assert embeddings.shape[0] == embeddings_class.shape[0]
    # TODO(synk): torch asserts embeddings_class.max() < C on concrete values;
    # here out-of-range labels silently yield loss == logsumexp instead of erroring.

    B, C = embeddings.shape
    dtype = embeddings.dtype
    itemsize = jnp.dtype(dtype).itemsize
    vmem_cap = _vmem_capacity_bytes()

    # Pad the class axis to a lane multiple with a large finite negative so the
    # (TILE_B, C) block, iota compare and lane reductions use full unmasked
    # vregs.  The fill is numerically inert: exp ~ 0 and labels < C never
    # select a padded column.
    C_pad = _round_up(C, 128)
    x = embeddings
    if C_pad != C:
        if jnp.issubdtype(dtype, jnp.floating):
            fill = float(jnp.finfo(dtype).min) / 2
        else:
            fill = -3e38
        x = jnp.pad(x, ((0, 0), (0, C_pad - C)), constant_values=fill)

    if tile_b is None:
        tile_b = _choose_tile_b(B, C_pad, itemsize, vmem_cap)
    b_pad = _round_up(B, tile_b)
    num_tiles = b_pad // tile_b

    y = embeddings_class.astype(jnp.int32).reshape(B, 1)
    if b_pad != B:
        x = jnp.pad(x, ((0, b_pad - B), (0, 0)))   # zero rows: finite log(Cp) loss, sliced off
        y = jnp.pad(y, ((0, b_pad - B), (0, 0)))

    bytes_per_row = C_pad * (2 * itemsize + 4 * 4) + 4 * 128 * 4
    vmem_needed = tile_b * bytes_per_row
    vmem_limit = int(min(vmem_cap * 3 // 4,
                         max(vmem_needed + (4 << 20), 16 << 20)))

    # Scheduler hint: the kernel is a pure HBM stream of the logits.
    cost = pl.CostEstimate(
        flops=5 * b_pad * C_pad,
        transcendentals=b_pad * C_pad,
        bytes_accessed=b_pad * C_pad * itemsize + 2 * b_pad * 4,
    )

    per_tile = pl.pallas_call(
        _ce_rows_kernel,
        out_shape=jax.ShapeDtypeStruct((num_tiles, 1, tile_b), jnp.float32),
        grid=(num_tiles,),
        in_specs=[
            pl.BlockSpec((tile_b, C_pad), lambda i: (i, 0)),   # logits row tile
            pl.BlockSpec((tile_b, 1), lambda i: (i, 0)),       # labels (tiny)
        ],
        out_specs=pl.BlockSpec((1, 1, tile_b), lambda i: (i, 0, 0)),  # lane-dense
        compiler_params=pltpu.CompilerParams(
            dimension_semantics=("parallel",),
            vmem_limit_bytes=vmem_limit,
        ),
        cost_estimate=cost,
    )(x, y)

    per_row = per_tile.reshape(b_pad)[:B]
    if reduction == 'mean':
        return jnp.mean(per_row)                 # global-batch mean in the wrapper
    return per_row


if __name__ == "__main__":
    key = jax.random.PRNGKey(0)
    k_emb, k_cls, k_emb2, k_cls2, k_emb3, k_cls3 = jax.random.split(key, 6)

    def reference(emb, cls):
        b = emb.shape[0]
        e = emb.astype(jnp.float32)
        return jnp.mean(jax.nn.logsumexp(e, axis=-1) - e[jnp.arange(b), cls])

    # Case 1: small shape matching the module's usage (batch=8, classes=32).
    B, C = 8, 32
    embeddings = jax.random.normal(k_emb, (B, C), dtype=jnp.float32)
    embeddings_class = jax.random.randint(k_cls, (B,), 0, C, dtype=jnp.int32)

    loss = contrastive_embedding_classification_loss(
        embeddings, None, None, reduction='mean',
        embeddings_class=embeddings_class)
    loss = jax.block_until_ready(loss)
    ref = reference(embeddings, embeddings_class)
    assert jnp.allclose(loss, ref, atol=1e-5, rtol=1e-5), (loss, ref)

    # Case 2: ragged batch + multi-tile grid + non-128-multiple class count
    # (exercises batch padding, class padding, and the lane-dense output).
    B2, C2 = 20, 160
    embeddings2 = jax.random.normal(k_emb2, (B2, C2), dtype=jnp.float32)
    embeddings_class2 = jax.random.randint(k_cls2, (B2,), 0, C2, dtype=jnp.int32)

    loss2 = contrastive_embedding_classification_loss(
        embeddings2, None, None, reduction='mean',
        embeddings_class=embeddings_class2, tile_b=8)
    loss2 = jax.block_until_ready(loss2)
    ref2 = reference(embeddings2, embeddings_class2)
    assert jnp.allclose(loss2, ref2, atol=1e-5, rtol=1e-5), (loss2, ref2)

    # Case 3: bf16 logits (exercises the 16-row sublane alignment path and the
    # in-kernel f32 cast).
    B3, C3 = 24, 100
    embeddings3 = jax.random.normal(k_emb3, (B3, C3), dtype=jnp.bfloat16)
    embeddings_class3 = jax.random.randint(k_cls3, (B3,), 0, C3, dtype=jnp.int32)

    loss3 = contrastive_embedding_classification_loss(
        embeddings3, None, None, reduction='mean',
        embeddings_class=embeddings_class3)
    loss3 = jax.block_until_ready(loss3)
    ref3 = reference(embeddings3, embeddings_class3)
    assert jnp.allclose(loss3, ref3, atol=1e-4, rtol=1e-4), (loss3, ref3)

    print("KERNEL_OK")
</pallas_src>

<mosaic_0001>
module attributes {stable_mosaic.version = 11 : i64} {
  func.func @_ce_rows_kernel(%arg0: i32, %arg1: memref<8x128xf32, #tpu.memory_space<vmem>>, %arg2: memref<8x1xi32, #tpu.memory_space<vmem>>, %arg3: memref<1x1x8xf32, #tpu.memory_space<vmem>>) attributes {dimension_semantics = [#tpu.dimension_semantics<parallel>], iteration_bounds = array<i64: 1>, scalar_prefetch = 0 : i64, scratch_operands = 0 : i64, tpu.core_type = #tpu.core_type<tc>, window_params = [{transform_indices = @transform_0, window_bounds = array<i64: 8, 128>}, {transform_indices = @transform_1, window_bounds = array<i64: 8, 1>}, {transform_indices = @transform_2, window_bounds = array<i64: 1, 1, 8>}]} {
    %c0 = arith.constant 0 : index
    %c0_0 = arith.constant 0 : index
    %0 = vector.load %arg1[%c0, %c0_0] : memref<8x128xf32, #tpu.memory_space<vmem>>, vector<8x128xf32>
    %c0_1 = arith.constant 0 : index
    %c0_2 = arith.constant 0 : index
    %1 = vector.load %arg2[%c0_1, %c0_2] : memref<8x1xi32, #tpu.memory_space<vmem>>, vector<8x1xi32>
    %cst = arith.constant dense<0xFF800000> : vector<8xf32>
    %2 = vector.multi_reduction <maximumf>, %0, %cst [1] : vector<8x128xf32> to vector<8xf32>
    %3 = vector.shape_cast %2 : vector<8xf32> to vector<8x1xf32>
    %4 = vector.broadcast %3 : vector<8x1xf32> to vector<8x128xf32>
    %5 = arith.subf %0, %4 : vector<8x128xf32>
    %6 = math.exp %5 : vector<8x128xf32>
    %cst_3 = arith.constant dense<0.000000e+00> : vector<8xf32>
    %7 = vector.multi_reduction <add>, %6, %cst_3 [1] : vector<8x128xf32> to vector<8xf32>
    %8 = vector.shape_cast %7 : vector<8xf32> to vector<8x1xf32>
    %9 = math.log %8 : vector<8x1xf32>
    %10 = tpu.iota {dimensions = array<i32: 1>} : vector<8x128xi32>
    %11 = vector.broadcast %1 : vector<8x1xi32> to vector<8x128xi32>
    %12 = arith.cmpi eq, %10, %11 : vector<8x128xi32>
    %cst_4 = arith.constant 0.000000e+00 : f32
    %13 = vector.broadcast %cst_4 : f32 to vector<8x128xf32>
    %14 = arith.select %12, %5, %13 : vector<8x128xi1>, vector<8x128xf32>
    %cst_5 = arith.constant dense<0.000000e+00> : vector<8xf32>
    %15 = vector.multi_reduction <add>, %14, %cst_5 [1] : vector<8x128xf32> to vector<8xf32>
    %16 = vector.shape_cast %15 : vector<8xf32> to vector<8x1xf32>
    %17 = arith.subf %9, %16 : vector<8x1xf32>
    %18 = vector.shape_cast %17 : vector<8x1xf32> to vector<1x1x8xf32>
    %c0_6 = arith.constant 0 : index
    %c0_7 = arith.constant 0 : index
    %c0_8 = arith.constant 0 : index
    %19 = vector.load %arg3[%c0_6, %c0_7, %c0_8] : memref<1x1x8xf32, #tpu.memory_space<vmem>>, vector<1x1x8xf32>
    tpu.vector_store %arg3[%c0_6, %c0_7, %c0_8], %18 {strides = array<i32>} : memref<1x1x8xf32, #tpu.memory_space<vmem>>, vector<1x1x8xf32>,
    return
  }
  func.func @transform_0(%arg0: i32) -> (i32, i32) {
    %c0_i32 = arith.constant 0 : i32
    %c0_i32_0 = arith.constant 0 : i32
    return %arg0, %c0_i32 : i32, i32
  }
  func.func @transform_1(%arg0: i32) -> (i32, i32) {
    %c0_i32 = arith.constant 0 : i32
    %c0_i32_0 = arith.constant 0 : i32
    return %arg0, %c0_i32 : i32, i32
  }
  func.func @transform_2(%arg0: i32) -> (i32, i32, i32) {
    %c0_i32 = arith.constant 0 : i32
    %c0_i32_0 = arith.constant 0 : i32
    %c0_i32_1 = arith.constant 0 : i32
    return %arg0, %c0_i32, %c0_i32_0 : i32, i32, i32
  }
}

</mosaic_0001>

<llo_original>
// kernel: tpu_custom_call.1
$region0: #{tpu_custom_call.1}
  #allocation0 [shape = 'u32[]', space=smem, size = 0x4, offset = 0x4, fixed_abs, tag = 'smem constant byte address 0x4 - core index']
  #allocation1 [shape = 'u32[72,128]{1,0:T(1,128)}', space=vmem, size = 0x9000, scoped, tag = 'internal scratch']
  %s0 = inlined_call_operand.vmem [shape: f32[8,128], index: 0, kind: input, shape index: {}]
  %s1 = inlined_call_operand.vmem [shape: s32[8,1], index: 1, kind: input, shape index: {}]
  %s2 = inlined_call_operand.hbm [shape: f32[1,1,8], index: 2, kind: output, shape index: {}]
  %s3 = sld [smem:[#allocation0]]
  $region18: #{tpu_custom_call.1} parent=0
    _
  %s5 = ssub.s32 1, %s3
  %s6 = scalar_select 0, %s5, %s3
  $region1: #{tpu_custom_call.1} parent=0
    #allocation2 [shape = 'u8[512]{0}', space=vmem, size = 0x400, scoped, tag = 'output window, operand 0, single buffered']
    #allocation3 [shape = 's32[1]{0}', space=sflag, size = 0x4, scoped, tag = 'scoped memory for tpu_custom_call.1']
    %7 = vsyncpa [#allocation3], 0
    // Predicated region
    $region2: #{tpu_custom_call.1} parent=1 // pred_check
      _
    $region3: #{tpu_custom_call.1} parent=1 // pred_check_branch
      %9 = sbr.rel (0) target = $region5
    $region4: #{tpu_custom_call.1} parent=1 // pred_region
      _
    $region5: #{tpu_custom_call.1} parent=1 // pred_fallthru
      _
    // Predicated region
    $region6: #{tpu_custom_call.1} parent=1 // pred_check
      _
    $region7: #{tpu_custom_call.1} parent=1 // pred_check_branch
      %11 = sbr.rel (0) target = $region9
    $region8: #{tpu_custom_call.1} parent=1 // pred_region
      _
    $region9: #{tpu_custom_call.1} parent=1 // pred_fallthru
      _
    %v12 = vld [vmem:[%s0] sm:$0xff]
    %v13 = vld [vmem:[%s1] sm:$0xff]
    %14 = vmax.xlane.f32.xlu0 %v12
    %v15 = vpop.xlane.xlu0 %14
    %v16 = vsub.f32 %v12, %v15
    %v17 = vmul.f32 %v16, 1.442695
    %v18 = vpow.pop %v17
    %19 = vadd.xlane.f32.xlu0 %v18
    %v20 = vpop.xlane.xlu0 %19
    %v21 = vlog2.pop %v20
    %v22 = vmul.f32 %v21, 0.6931472
    %v23 = vlaneseq
    %v24 = vand.u32 %v23, 127
    %25 = vset.pattern.permute.xlu0 0
    %26 = vperm.xlu0 %25, %v13
    %v27 = vpop.permute.xlu0 %26
    %vm28 = vcmp.eq.s32.totalorder %v24, %v27
    %v29 = vsel %vm28, %v16, 0.0
    %30 = vadd.xlane.f32.xlu0 %v29
    %v31 = vpop.xlane.xlu0 %30
    %v32 = vsub.f32 %v22, %v31
    %v34 = vperm.slane %v32, %v24
    %vm36 = vcmask 57344
    %37 = vst.msk [vmem:[#allocation2] sm:$0x1] %vm36, %v34
    // Predicated region
    $region10: #{tpu_custom_call.1} parent=1 // pred_check
      _
    $region11: #{tpu_custom_call.1} parent=1 // pred_check_branch
      %39 = sbr.rel (0) target = $region13
    $region12: #{tpu_custom_call.1} parent=1 // pred_region
      %41 = vsyncadd [#allocation3], 0
      %s43 = sshll.u32 [#allocation2], 4
      %s44 = int_to_ptr.vmem [resolvable:$true] %s43
      %s45 = sshll.u32 %s2, 4
      %s46 = int_to_ptr.hbm [resolvable:$true] %s45
      %48 = dma.vmem_to_hbm [thread:$0]  %s44, 16, %s46, [#allocation3]
    $region13: #{tpu_custom_call.1} parent=1 // pred_fallthru
      _
    // Predicated region
    $region14: #{tpu_custom_call.1} parent=1 // pred_check
      _
    $region15: #{tpu_custom_call.1} parent=1 // pred_check_branch
      %50 = sbr.rel (0) target = $region17
    $region16: #{tpu_custom_call.1} parent=1 // pred_region
      %52 = dma.done [#allocation3], 16
    $region17: #{tpu_custom_call.1} parent=1 // pred_fallthru
      _
    %53 = vsyncpa [#allocation3], 1

</llo_original>
